<compile_context>
chip_gen: v5e
topology: v5e:2x2
jax: 0.10.0
libtpu: 0.0.40
codegen_flags: <defaults>
</compile_context>

<pallas_src>
import functools

import jax
import jax.numpy as jnp
from jax.experimental import pallas as pl
from jax.experimental.pallas import tpu as pltpu


# ----------------------------- Pallas kernel --------------------------------
def predictor_kernel(x_ref, wtaps_ref, bconv_ref, wfc_ref, bfc_ref, out_ref,
                     *, H, W):
    """Fused Conv2d(3x3, pad=1) + ReLU + GAP + Linear for one batch element.

    x_ref     : [Cin, L]        bf16, L = (H+2)*W + 2  (zero-padded top/bottom
                                rows + 1 pad element front/back so every tap
                                window is a static, in-bounds lane slice)
    wtaps_ref : [9, Cout, Cin]  bf16, tap index = kh*3 + kw
    bconv_ref : [Cout, 1]       f32
    wfc_ref   : [Cout, NC]      f32, already scaled by 1/(H*W)
    bfc_ref   : [1, NC]         f32
    out_ref   : [1, NC]         f32
    """
    P = H * W
    Cout = wtaps_ref.shape[1]

    # x-position of every output pixel along the lane axis (W-boundary masks).
    xpos = jax.lax.broadcasted_iota(jnp.int32, (1, P), 1) % W

    conv = jnp.zeros((Cout, P), jnp.float32)
    for kw in range(3):                       # static Python loops -> unrolled
        part = jnp.zeros((Cout, P), jnp.float32)
        for kh in range(3):
            tap = kh * 3 + kw
            s = kh * W + kw                   # static window start (lanes)
            xs = x_ref[:, s:s + P]            # [Cin, P] bf16 shifted view
            part = part + jax.lax.dot_general(
                wtaps_ref[tap], xs,           # [Cout, Cin] x [Cin, P] on MXU
                dimension_numbers=(((1,), (0,)), ((), ())),
                preferred_element_type=jnp.float32)
        # Horizontal out-of-bounds taps masked post-matmul in f32 (vertical
        # OOB is handled by the zero-padded rows baked into x).
        if kw == 0:
            part = jnp.where(xpos >= 1, part, 0.0)
        elif kw == 2:
            part = jnp.where(xpos <= W - 2, part, 0.0)
        conv = conv + part

    # Bias + ReLU on the lane-dense f32 activation.
    act = jnp.maximum(conv + bconv_ref[...], 0.0)         # [Cout, P]

    # Global average pool: lane-axis sum; the 1/P factor is folded into wfc.
    gap = jnp.sum(act, axis=1, keepdims=True)             # [Cout, 1]

    # Tiny classifier head: logits[1, NC] = gap^T @ wfc_scaled + bfc.
    logits = jnp.sum(gap * wfc_ref[...], axis=0, keepdims=True) + bfc_ref[...]
    out_ref[...] = logits.astype(out_ref.dtype)


# ------------------------------ JAX wrapper ----------------------------------
def bengali_classifier_single(x, params):
    """Pallas equivalent of BengaliClassifier_Single(predictor).forward(x) -> [pred]."""
    wconv, bconv, wfc, bfc = params
    B, Cin, H, W = x.shape
    Cout, _, KH, KW = wconv.shape
    NC = wfc.shape[1]
    P = H * W
    L = (H + 2) * W + 2

    # Row-padded, flattened, bf16 activations: [B, Cin, L] (no im2col blow-up).
    xpad = jnp.pad(x, ((0, 0), (0, 0), (1, 1), (0, 0)))           # zero rows
    xflat = jnp.pad(xpad.reshape(B, Cin, (H + 2) * W),
                    ((0, 0), (0, 0), (1, 1)))                     # front/back elem
    xflat = xflat.astype(jnp.bfloat16)

    # Conv weight as 9 [Cout, Cin] taps (tap = kh*3 + kw), bf16 for the MXU.
    wtaps = jnp.transpose(wconv, (2, 3, 0, 1)).reshape(KH * KW, Cout, Cin)
    wtaps = wtaps.astype(jnp.bfloat16)
    bconv_col = bconv.reshape(Cout, 1).astype(jnp.float32)
    wfc_scaled = (wfc / float(P)).astype(jnp.float32)             # fold GAP 1/P
    bfc_row = bfc.reshape(1, NC).astype(jnp.float32)

    kernel = functools.partial(predictor_kernel, H=H, W=W)

    out = pl.pallas_call(
        kernel,
        out_shape=jax.ShapeDtypeStruct((B, 1, NC), jnp.float32),
        grid_spec=pltpu.PrefetchScalarGridSpec(
            num_scalar_prefetch=0,
            grid=(B,),                            # one batch element per step
            in_specs=[
                pl.BlockSpec((None, Cin, L), lambda b: (b, 0, 0)),
                pl.BlockSpec((KH * KW, Cout, Cin), lambda b: (0, 0, 0)),
                pl.BlockSpec((Cout, 1), lambda b: (0, 0)),
                pl.BlockSpec((Cout, NC), lambda b: (0, 0)),
                pl.BlockSpec((1, NC), lambda b: (0, 0)),
            ],
            out_specs=pl.BlockSpec((None, 1, NC), lambda b: (b, 0, 0)),
        ),
        compiler_params=pltpu.CompilerParams(
            dimension_semantics=("parallel",),    # pipeline + megacore shard batch
        ),
    )(xflat, wtaps, bconv_col, wfc_scaled, bfc_row)

    return [out.reshape(B, NC)]                   # matches `return [pred]`


# --------------------------- pure-JAX reference ------------------------------
def reference(x, wconv, bconv, wfc, bfc):
    conv = jax.lax.conv_general_dilated(
        x, wconv, window_strides=(1, 1), padding=((1, 1), (1, 1)),
        dimension_numbers=("NCHW", "OIHW", "NCHW"),
        precision=jax.lax.Precision.HIGHEST)
    act = jax.nn.relu(conv + bconv[None, :, None, None])
    gap = act.mean(axis=(2, 3))
    return jnp.dot(gap, wfc, precision=jax.lax.Precision.HIGHEST) + bfc


# --------------------------------- main ---------------------------------------
if __name__ == "__main__":
    B, Cin, H, W = 2, 4, 16, 16
    Cout, NC = 8, 16

    key = jax.random.PRNGKey(0)
    k1, k2, k3, k4, k5 = jax.random.split(key, 5)
    x = jax.random.normal(k1, (B, Cin, H, W), dtype=jnp.float32)
    wconv = jax.random.normal(k2, (Cout, Cin, 3, 3), dtype=jnp.float32) * 0.1
    bconv = jax.random.normal(k3, (Cout,), dtype=jnp.float32) * 0.1
    wfc = jax.random.normal(k4, (Cout, NC), dtype=jnp.float32) * 0.1   # Linear.weight.T
    bfc = jax.random.normal(k5, (NC,), dtype=jnp.float32) * 0.1
    params = (wconv, bconv, wfc, bfc)

    out_list = jax.jit(bengali_classifier_single)(x, params)
    pred = jax.block_until_ready(out_list[0])
    assert pred.shape == (B, NC)

    # Reference uses the same bf16 rounding of the MXU operands; accumulation
    # stays f32 in both paths, so the comparison is tight.
    xq = x.astype(jnp.bfloat16).astype(jnp.float32)
    wq = wconv.astype(jnp.bfloat16).astype(jnp.float32)
    ref = reference(xq, wq, bconv, wfc, bfc)
    assert jnp.allclose(pred, ref, atol=1e-3, rtol=1e-3), (pred, ref)

    print("KERNEL_OK")
</pallas_src>

<mosaic_0001>
module attributes {stable_mosaic.version = 11 : i64} {
  func.func @predictor_kernel(%arg0: i32, %arg1: memref<1x4x290xbf16, #tpu.memory_space<vmem>>, %arg2: memref<9x8x4xbf16, #tpu.memory_space<vmem>>, %arg3: memref<8x1xf32, #tpu.memory_space<vmem>>, %arg4: memref<8x16xf32, #tpu.memory_space<vmem>>, %arg5: memref<1x16xf32, #tpu.memory_space<vmem>>, %arg6: memref<1x1x16xf32, #tpu.memory_space<vmem>>) attributes {dimension_semantics = [#tpu.dimension_semantics<parallel>], iteration_bounds = array<i64: 2>, scalar_prefetch = 0 : i64, scratch_operands = 0 : i64, tpu.core_type = #tpu.core_type<tc>, window_params = [{transform_indices = @transform_0, window_bounds = array<i64: 1, 4, 290>}, {pipeline_mode = #tpu.pipeline_mode<synchronous>, transform_indices = @transform_1, window_bounds = array<i64: 9, 8, 4>}, {pipeline_mode = #tpu.pipeline_mode<synchronous>, transform_indices = @transform_2, window_bounds = array<i64: 8, 1>}, {pipeline_mode = #tpu.pipeline_mode<synchronous>, transform_indices = @transform_3, window_bounds = array<i64: 8, 16>}, {pipeline_mode = #tpu.pipeline_mode<synchronous>, transform_indices = @transform_4, window_bounds = array<i64: 1, 16>}, {transform_indices = @transform_5, window_bounds = array<i64: 1, 1, 16>}]} {
    %0 = tpu.iota {dimensions = array<i32: 1>} : vector<1x256xi32>
    %c16_i32 = arith.constant 16 : i32
    %c0_i32 = arith.constant 0 : i32
    %1 = arith.cmpi eq, %c16_i32, %c0_i32 : i32
    %c1_i32 = arith.constant 1 : i32
    %2 = arith.select %1, %c1_i32, %c16_i32 : i32
    %3 = vector.broadcast %2 : i32 to vector<1x256xi32>
    %4 = arith.remsi %0, %3 : vector<1x256xi32>
    %c0_i32_0 = arith.constant 0 : i32
    %5 = vector.broadcast %c0_i32_0 : i32 to vector<1x256xi32>
    %6 = arith.cmpi ne, %4, %5 : vector<1x256xi32>
    %c0_i32_1 = arith.constant 0 : i32
    %7 = vector.broadcast %c0_i32_1 : i32 to vector<1x256xi32>
    %8 = arith.cmpi slt, %4, %7 : vector<1x256xi32>
    %c0_i32_2 = arith.constant 0 : i32
    %9 = arith.cmpi slt, %2, %c0_i32_2 : i32
    %10 = vector.broadcast %9 : i1 to vector<1x256xi1>
    %11 = vector.broadcast %10 : vector<1x256xi1> to vector<1x256xi1>
    %12 = arith.xori %8, %11 : vector<1x256xi1>
    %13 = arith.andi %12, %6 : vector<1x256xi1>
    %14 = vector.broadcast %2 : i32 to vector<1x256xi32>
    %15 = arith.addi %4, %14 : vector<1x256xi32>
    %16 = arith.select %13, %15, %4 : vector<1x256xi1>, vector<1x256xi32>
    %cst = arith.constant 0.000000e+00 : f32
    %17 = vector.broadcast %cst : f32 to vector<8x256xf32>
    %cst_3 = arith.constant 0.000000e+00 : f32
    %18 = vector.broadcast %cst_3 : f32 to vector<8x256xf32>
    %c0 = arith.constant 0 : index
    %c0_4 = arith.constant 0 : index
    %c0_5 = arith.constant 0 : index
    %19 = vector.load %arg1[%c0, %c0_4, %c0_5] : memref<1x4x290xbf16, #tpu.memory_space<vmem>>, vector<1x4x256xbf16>
    %20 = vector.shape_cast %19 : vector<1x4x256xbf16> to vector<4x256xbf16>
    %c0_6 = arith.constant 0 : index
    %c0_7 = arith.constant 0 : index
    %c0_8 = arith.constant 0 : index
    %21 = vector.load %arg2[%c0_6, %c0_7, %c0_8] : memref<9x8x4xbf16, #tpu.memory_space<vmem>>, vector<1x8x4xbf16>
    %22 = vector.shape_cast %21 : vector<1x8x4xbf16> to vector<8x4xbf16>
    %cst_9 = arith.constant dense<0.000000e+00> : vector<8x256xf32>
    %23 = tpu.matmul %22, %20, %cst_9 {dimension_numbers = #tpu.dot_dimension_numbers<[1], [0], [0], [1], [0, 0, 1, 1], [], []>} : vector<8x4xbf16>, vector<4x256xbf16>, vector<8x256xf32> -> vector<8x256xf32>
    %24 = arith.addf %18, %23 : vector<8x256xf32>
    %c0_10 = arith.constant 0 : index
    %c0_11 = arith.constant 0 : index
    %c16 = arith.constant 16 : index
    %25 = vector.load %arg1[%c0_10, %c0_11, %c16] : memref<1x4x290xbf16, #tpu.memory_space<vmem>>, vector<1x4x256xbf16>
    %26 = vector.shape_cast %25 : vector<1x4x256xbf16> to vector<4x256xbf16>
    %c3 = arith.constant 3 : index
    %c0_12 = arith.constant 0 : index
    %c0_13 = arith.constant 0 : index
    %27 = vector.load %arg2[%c3, %c0_12, %c0_13] : memref<9x8x4xbf16, #tpu.memory_space<vmem>>, vector<1x8x4xbf16>
    %28 = vector.shape_cast %27 : vector<1x8x4xbf16> to vector<8x4xbf16>
    %cst_14 = arith.constant dense<0.000000e+00> : vector<8x256xf32>
    %29 = tpu.matmul %28, %26, %cst_14 {dimension_numbers = #tpu.dot_dimension_numbers<[1], [0], [0], [1], [0, 0, 1, 1], [], []>} : vector<8x4xbf16>, vector<4x256xbf16>, vector<8x256xf32> -> vector<8x256xf32>
    %30 = arith.addf %24, %29 : vector<8x256xf32>
    %c0_15 = arith.constant 0 : index
    %c0_16 = arith.constant 0 : index
    %c32 = arith.constant 32 : index
    %31 = vector.load %arg1[%c0_15, %c0_16, %c32] : memref<1x4x290xbf16, #tpu.memory_space<vmem>>, vector<1x4x256xbf16>
    %32 = vector.shape_cast %31 : vector<1x4x256xbf16> to vector<4x256xbf16>
    %c6 = arith.constant 6 : index
    %c0_17 = arith.constant 0 : index
    %c0_18 = arith.constant 0 : index
    %33 = vector.load %arg2[%c6, %c0_17, %c0_18] : memref<9x8x4xbf16, #tpu.memory_space<vmem>>, vector<1x8x4xbf16>
    %34 = vector.shape_cast %33 : vector<1x8x4xbf16> to vector<8x4xbf16>
    %cst_19 = arith.constant dense<0.000000e+00> : vector<8x256xf32>
    %35 = tpu.matmul %34, %32, %cst_19 {dimension_numbers = #tpu.dot_dimension_numbers<[1], [0], [0], [1], [0, 0, 1, 1], [], []>} : vector<8x4xbf16>, vector<4x256xbf16>, vector<8x256xf32> -> vector<8x256xf32>
    %36 = arith.addf %30, %35 : vector<8x256xf32>
    %c1_i32_20 = arith.constant 1 : i32
    %37 = vector.broadcast %c1_i32_20 : i32 to vector<1x256xi32>
    %38 = arith.cmpi sge, %16, %37 : vector<1x256xi32>
    %cst_21 = arith.constant 0.000000e+00 : f32
    %39 = vector.shape_cast %38 : vector<1x256xi1> to vector<1x256xi1>
    %40 = vector.broadcast %39 : vector<1x256xi1> to vector<8x256xi1>
    %41 = vector.broadcast %cst_21 : f32 to vector<8x256xf32>
    %42 = arith.select %40, %36, %41 : vector<8x256xi1>, vector<8x256xf32>
    %43 = arith.addf %17, %42 : vector<8x256xf32>
    %cst_22 = arith.constant 0.000000e+00 : f32
    %44 = vector.broadcast %cst_22 : f32 to vector<8x256xf32>
    %c0_23 = arith.constant 0 : index
    %c0_24 = arith.constant 0 : index
    %c1 = arith.constant 1 : index
    %45 = vector.load %arg1[%c0_23, %c0_24, %c1] : memref<1x4x290xbf16, #tpu.memory_space<vmem>>, vector<1x4x256xbf16>
    %46 = vector.shape_cast %45 : vector<1x4x256xbf16> to vector<4x256xbf16>
    %c1_25 = arith.constant 1 : index
    %c0_26 = arith.constant 0 : index
    %c0_27 = arith.constant 0 : index
    %47 = vector.load %arg2[%c1_25, %c0_26, %c0_27] : memref<9x8x4xbf16, #tpu.memory_space<vmem>>, vector<1x8x4xbf16>
    %48 = vector.shape_cast %47 : vector<1x8x4xbf16> to vector<8x4xbf16>
    %cst_28 = arith.constant dense<0.000000e+00> : vector<8x256xf32>
    %49 = tpu.matmul %48, %46, %cst_28 {dimension_numbers = #tpu.dot_dimension_numbers<[1], [0], [0], [1], [0, 0, 1, 1], [], []>} : vector<8x4xbf16>, vector<4x256xbf16>, vector<8x256xf32> -> vector<8x256xf32>
    %50 = arith.addf %44, %49 : vector<8x256xf32>
    %c0_29 = arith.constant 0 : index
    %c0_30 = arith.constant 0 : index
    %c17 = arith.constant 17 : index
    %51 = vector.load %arg1[%c0_29, %c0_30, %c17] : memref<1x4x290xbf16, #tpu.memory_space<vmem>>, vector<1x4x256xbf16>
    %52 = vector.shape_cast %51 : vector<1x4x256xbf16> to vector<4x256xbf16>
    %c4 = arith.constant 4 : index
    %c0_31 = arith.constant 0 : index
    %c0_32 = arith.constant 0 : index
    %53 = vector.load %arg2[%c4, %c0_31, %c0_32] : memref<9x8x4xbf16, #tpu.memory_space<vmem>>, vector<1x8x4xbf16>
    %54 = vector.shape_cast %53 : vector<1x8x4xbf16> to vector<8x4xbf16>
    %cst_33 = arith.constant dense<0.000000e+00> : vector<8x256xf32>
    %55 = tpu.matmul %54, %52, %cst_33 {dimension_numbers = #tpu.dot_dimension_numbers<[1], [0], [0], [1], [0, 0, 1, 1], [], []>} : vector<8x4xbf16>, vector<4x256xbf16>, vector<8x256xf32> -> vector<8x256xf32>
    %56 = arith.addf %50, %55 : vector<8x256xf32>
    %c0_34 = arith.constant 0 : index
    %c0_35 = arith.constant 0 : index
    %c33 = arith.constant 33 : index
    %57 = vector.load %arg1[%c0_34, %c0_35, %c33] : memref<1x4x290xbf16, #tpu.memory_space<vmem>>, vector<1x4x256xbf16>
    %58 = vector.shape_cast %57 : vector<1x4x256xbf16> to vector<4x256xbf16>
    %c7 = arith.constant 7 : index
    %c0_36 = arith.constant 0 : index
    %c0_37 = arith.constant 0 : index
    %59 = vector.load %arg2[%c7, %c0_36, %c0_37] : memref<9x8x4xbf16, #tpu.memory_space<vmem>>, vector<1x8x4xbf16>
    %60 = vector.shape_cast %59 : vector<1x8x4xbf16> to vector<8x4xbf16>
    %cst_38 = arith.constant dense<0.000000e+00> : vector<8x256xf32>
    %61 = tpu.matmul %60, %58, %cst_38 {dimension_numbers = #tpu.dot_dimension_numbers<[1], [0], [0], [1], [0, 0, 1, 1], [], []>} : vector<8x4xbf16>, vector<4x256xbf16>, vector<8x256xf32> -> vector<8x256xf32>
    %62 = arith.addf %56, %61 : vector<8x256xf32>
    %63 = arith.addf %43, %62 : vector<8x256xf32>
    %cst_39 = arith.constant 0.000000e+00 : f32
    %64 = vector.broadcast %cst_39 : f32 to vector<8x256xf32>
    %c0_40 = arith.constant 0 : index
    %c0_41 = arith.constant 0 : index
    %c2 = arith.constant 2 : index
    %65 = vector.load %arg1[%c0_40, %c0_41, %c2] : memref<1x4x290xbf16, #tpu.memory_space<vmem>>, vector<1x4x256xbf16>
    %66 = vector.shape_cast %65 : vector<1x4x256xbf16> to vector<4x256xbf16>
    %c2_42 = arith.constant 2 : index
    %c0_43 = arith.constant 0 : index
    %c0_44 = arith.constant 0 : index
    %67 = vector.load %arg2[%c2_42, %c0_43, %c0_44] : memref<9x8x4xbf16, #tpu.memory_space<vmem>>, vector<1x8x4xbf16>
    %68 = vector.shape_cast %67 : vector<1x8x4xbf16> to vector<8x4xbf16>
    %cst_45 = arith.constant dense<0.000000e+00> : vector<8x256xf32>
    %69 = tpu.matmul %68, %66, %cst_45 {dimension_numbers = #tpu.dot_dimension_numbers<[1], [0], [0], [1], [0, 0, 1, 1], [], []>} : vector<8x4xbf16>, vector<4x256xbf16>, vector<8x256xf32> -> vector<8x256xf32>
    %70 = arith.addf %64, %69 : vector<8x256xf32>
    %c0_46 = arith.constant 0 : index
    %c0_47 = arith.constant 0 : index
    %c18 = arith.constant 18 : index
    %71 = vector.load %arg1[%c0_46, %c0_47, %c18] : memref<1x4x290xbf16, #tpu.memory_space<vmem>>, vector<1x4x256xbf16>
    %72 = vector.shape_cast %71 : vector<1x4x256xbf16> to vector<4x256xbf16>
    %c5 = arith.constant 5 : index
    %c0_48 = arith.constant 0 : index
    %c0_49 = arith.constant 0 : index
    %73 = vector.load %arg2[%c5, %c0_48, %c0_49] : memref<9x8x4xbf16, #tpu.memory_space<vmem>>, vector<1x8x4xbf16>
    %74 = vector.shape_cast %73 : vector<1x8x4xbf16> to vector<8x4xbf16>
    %cst_50 = arith.constant dense<0.000000e+00> : vector<8x256xf32>
    %75 = tpu.matmul %74, %72, %cst_50 {dimension_numbers = #tpu.dot_dimension_numbers<[1], [0], [0], [1], [0, 0, 1, 1], [], []>} : vector<8x4xbf16>, vector<4x256xbf16>, vector<8x256xf32> -> vector<8x256xf32>
    %76 = arith.addf %70, %75 : vector<8x256xf32>
    %c0_51 = arith.constant 0 : index
    %c0_52 = arith.constant 0 : index
    %c34 = arith.constant 34 : index
    %77 = vector.load %arg1[%c0_51, %c0_52, %c34] : memref<1x4x290xbf16, #tpu.memory_space<vmem>>, vector<1x4x256xbf16>
    %78 = vector.shape_cast %77 : vector<1x4x256xbf16> to vector<4x256xbf16>
    %c8 = arith.constant 8 : index
    %c0_53 = arith.constant 0 : index
    %c0_54 = arith.constant 0 : index
    %79 = vector.load %arg2[%c8, %c0_53, %c0_54] : memref<9x8x4xbf16, #tpu.memory_space<vmem>>, vector<1x8x4xbf16>
    %80 = vector.shape_cast %79 : vector<1x8x4xbf16> to vector<8x4xbf16>
    %cst_55 = arith.constant dense<0.000000e+00> : vector<8x256xf32>
    %81 = tpu.matmul %80, %78, %cst_55 {dimension_numbers = #tpu.dot_dimension_numbers<[1], [0], [0], [1], [0, 0, 1, 1], [], []>} : vector<8x4xbf16>, vector<4x256xbf16>, vector<8x256xf32> -> vector<8x256xf32>
    %82 = arith.addf %76, %81 : vector<8x256xf32>
    %c14_i32 = arith.constant 14 : i32
    %83 = vector.broadcast %c14_i32 : i32 to vector<1x256xi32>
    %84 = arith.cmpi sle, %16, %83 : vector<1x256xi32>
    %cst_56 = arith.constant 0.000000e+00 : f32
    %85 = vector.shape_cast %84 : vector<1x256xi1> to vector<1x256xi1>
    %86 = vector.broadcast %85 : vector<1x256xi1> to vector<8x256xi1>
    %87 = vector.broadcast %cst_56 : f32 to vector<8x256xf32>
    %88 = arith.select %86, %82, %87 : vector<8x256xi1>, vector<8x256xf32>
    %89 = arith.addf %63, %88 : vector<8x256xf32>
    %c0_57 = arith.constant 0 : index
    %c0_58 = arith.constant 0 : index
    %90 = vector.load %arg3[%c0_57, %c0_58] : memref<8x1xf32, #tpu.memory_space<vmem>>, vector<8x1xf32>
    %91 = vector.broadcast %90 : vector<8x1xf32> to vector<8x256xf32>
    %92 = arith.addf %89, %91 : vector<8x256xf32>
    %cst_59 = arith.constant 0.000000e+00 : f32
    %93 = vector.broadcast %cst_59 : f32 to vector<8x256xf32>
    %94 = arith.maximumf %92, %93 : vector<8x256xf32>
    %cst_60 = arith.constant dense<0.000000e+00> : vector<8xf32>
    %95 = vector.multi_reduction <add>, %94, %cst_60 [1] : vector<8x256xf32> to vector<8xf32>
    %96 = vector.shape_cast %95 : vector<8xf32> to vector<8x1xf32>
    %c0_61 = arith.constant 0 : index
    %c0_62 = arith.constant 0 : index
    %97 = vector.load %arg4[%c0_61, %c0_62] : memref<8x16xf32, #tpu.memory_space<vmem>>, vector<8x16xf32>
    %98 = vector.broadcast %96 : vector<8x1xf32> to vector<8x16xf32>
    %99 = arith.mulf %98, %97 : vector<8x16xf32>
    %cst_63 = arith.constant dense<0.000000e+00> : vector<16xf32>
    %100 = vector.multi_reduction <add>, %99, %cst_63 [0] : vector<8x16xf32> to vector<16xf32>
    %101 = vector.shape_cast %100 : vector<16xf32> to vector<1x16xf32>
    %c0_64 = arith.constant 0 : index
    %c0_65 = arith.constant 0 : index
    %102 = vector.load %arg5[%c0_64, %c0_65] : memref<1x16xf32, #tpu.memory_space<vmem>>, vector<1x16xf32>
    %103 = arith.addf %101, %102 : vector<1x16xf32>
    %c0_66 = arith.constant 0 : index
    %c0_67 = arith.constant 0 : index
    %c0_68 = arith.constant 0 : index
    %104 = vector.load %arg6[%c0_66, %c0_67, %c0_68] : memref<1x1x16xf32, #tpu.memory_space<vmem>>, vector<1x1x16xf32>
    %105 = vector.shape_cast %104 : vector<1x1x16xf32> to vector<1x16xf32>
    %106 = vector.shape_cast %103 : vector<1x16xf32> to vector<1x1x16xf32>
    tpu.vector_store %arg6[%c0_66, %c0_67, %c0_68], %106 {strides = array<i32>} : memref<1x1x16xf32, #tpu.memory_space<vmem>>, vector<1x1x16xf32>,
    return
  }
  func.func @transform_0(%arg0: i32) -> (i32, i32, i32) {
    %c0_i32 = arith.constant 0 : i32
    %c0_i32_0 = arith.constant 0 : i32
    %c0_i32_1 = arith.constant 0 : i32
    return %arg0, %c0_i32, %c0_i32_0 : i32, i32, i32
  }
  func.func @transform_1(%arg0: i32) -> (i32, i32, i32) {
    %c0_i32 = arith.constant 0 : i32
    %c0_i32_0 = arith.constant 0 : i32
    %c0_i32_1 = arith.constant 0 : i32
    %c0_i32_2 = arith.constant 0 : i32
    return %c0_i32, %c0_i32_0, %c0_i32_1 : i32, i32, i32
  }
  func.func @transform_2(%arg0: i32) -> (i32, i32) {
    %c0_i32 = arith.constant 0 : i32
    %c0_i32_0 = arith.constant 0 : i32
    %c0_i32_1 = arith.constant 0 : i32
    return %c0_i32, %c0_i32_0 : i32, i32
  }
  func.func @transform_3(%arg0: i32) -> (i32, i32) {
    %c0_i32 = arith.constant 0 : i32
    %c0_i32_0 = arith.constant 0 : i32
    %c0_i32_1 = arith.constant 0 : i32
    return %c0_i32, %c0_i32_0 : i32, i32
  }
  func.func @transform_4(%arg0: i32) -> (i32, i32) {
    %c0_i32 = arith.constant 0 : i32
    %c0_i32_0 = arith.constant 0 : i32
    %c0_i32_1 = arith.constant 0 : i32
    return %c0_i32, %c0_i32_0 : i32, i32
  }
  func.func @transform_5(%arg0: i32) -> (i32, i32, i32) {
    %c0_i32 = arith.constant 0 : i32
    %c0_i32_0 = arith.constant 0 : i32
    %c0_i32_1 = arith.constant 0 : i32
    return %arg0, %c0_i32, %c0_i32_0 : i32, i32, i32
  }
}

</mosaic_0001>

<llo_original>
// kernel: bengali_classifier_single.1
$region0: #{bengali_classifier_single.1}
  #allocation0 [shape = 'u32[]', space=smem, size = 0x4, offset = 0x4, fixed_abs, tag = 'smem constant byte address 0x4 - core index']
  #allocation1 [shape = 'u32[72,128]{1,0:T(1,128)}', space=vmem, size = 0x9000, scoped, tag = 'internal scratch']
  %s0 = inlined_call_operand.vmem [shape: bf16[2,4,290], index: 0, kind: input, shape index: {}]
  %s1 = inlined_call_operand.vmem [shape: bf16[9,8,4], index: 1, kind: input, shape index: {}]
  %s2 = inlined_call_operand.vmem [shape: f32[8,1], index: 2, kind: input, shape index: {}]
  %s3 = inlined_call_operand.vmem [shape: f32[8,16], index: 3, kind: input, shape index: {}]
  %s4 = inlined_call_operand.vmem [shape: f32[1,16], index: 4, kind: input, shape index: {}]
  %s5 = inlined_call_operand.hbm [shape: f32[2,1,16], index: 5, kind: output, shape index: {}]
  %s6 = sld [smem:[#allocation0]]
  $region53: #{bengali_classifier_single.1} parent=0
    _
  %s8 = ssub.s32 1, %s6
  %s9 = scalar_select 0, %s8, %s6
  $region1: #{bengali_classifier_single.1} parent=0
    #allocation2 [shape = 'u8[1024]{0}', space=vmem, size = 0x400, scoped, tag = 'output window, operand 0']
    #allocation3 [shape = 's32[2]{0}', space=sflag, size = 0x8, scoped, tag = 'scoped memory for bengali_classifier_single.1']
    %10 = vsyncpa [#allocation3], 0
    %s11 = scalar_lea.sflag [#allocation3], 1
    %12 = vsyncpa %s11, 0
    loop: start=0, step=1, limit=4
    $region2: #{bengali_classifier_single.1} parent=1 // loop_pre_header
      _
    $region3: #{bengali_classifier_single.1} parent=1 // loop_header
      %s14 = sphi 0, %s18
      %p15 = scmp.ge.s32.totalorder %s14, 4
      %s24 = sphi 0, %s26
      %s27 = sphi 0, %s24
      %s28 = sphi 0, %s27
      %s44 = sphi 0, %s28
      %s48 = sphi 0, %s48
      %s50 = sphi 0, %s48
      %s51 = sphi 0, %s50
      %s65 = sphi 0, %s51
      %s69 = sphi 0, %s69
      %s71 = sphi 0, %s69
      %s72 = sphi 0, %s71
      %s86 = sphi 0, %s72
      %s90 = sphi 0, %s90
      %s92 = sphi 0, %s90
      %s93 = sphi 0, %s92
      %s107 = sphi 0, %s93
      %s111 = sphi 0, %s111
      %s113 = sphi 0, %s111
      %s114 = sphi 0, %s113
      %s128 = sphi 0, %s114
      %s134 = sphi 0, %s136
      %s137 = sphi 0, %s134
      %s138 = sphi 0, %s137
      %s154 = sphi 0, %s138
    $region4: #{bengali_classifier_single.1} parent=1 // loop_header_branch
      %17 = sbr.rel (%p15) target = $region8
    $region5: #{bengali_classifier_single.1} parent=1 // loop_body
      %s19 = ssub.s32 %s14, 1
      %s20 = ssub.s32 %s14, 2
      %s21 = sadd.s32 %s14, 1
      %s22 = ssub.s32 %s14, %s21
      %p23 = scmp.eq.s32.totalorder %s22, 0
      %s25 = sadd.s32 %s24, 1
      %s26 = scalar_select %p23, %s24, %s25
      %p29 = pneg %p23
      %p30 = scmp.eq.s32.totalorder %s14, 1
      %p31 = por %p29, %p30
      %p32 = scmp.ne.s32.totalorder %s24, %s27
      %p33 = scmp.eq.s32.totalorder %s14, 0
      %p34 = por %p32, %p33
      %p35 = scmp.ne.s32.totalorder %s24, %s27
      %p36 = scmp.eq.s32.totalorder %s19, 1
      %p37 = por %p35, %p36
      %p38 = scmp.ne.s32.totalorder %s27, %s28
      %p39 = scmp.eq.s32.totalorder %s19, 0
      %p40 = por %p38, %p39
      %p41 = scmp.ne.s32.totalorder %s27, %s28
      %p42 = scmp.eq.s32.totalorder %s20, 1
      %p43 = por %p41, %p42
      %p45 = scmp.ne.s32.totalorder %s28, %s44
      %p46 = scmp.eq.s32.totalorder %s20, 0
      %p47 = por %p45, %p46
      %s49 = sadd.s32 %s48, 1
      %p52 = scmp.eq.s32.totalorder %s14, 1
      %p53 = scmp.ne.s32.totalorder %s48, %s50
      %p54 = scmp.eq.s32.totalorder %s14, 0
      %p55 = por %p53, %p54
      %p56 = scmp.ne.s32.totalorder %s48, %s50
      %p57 = scmp.eq.s32.totalorder %s19, 1
      %p58 = por %p56, %p57
      %p59 = scmp.ne.s32.totalorder %s50, %s51
      %p60 = scmp.eq.s32.totalorder %s19, 0
      %p61 = por %p59, %p60
      %p62 = scmp.ne.s32.totalorder %s50, %s51
      %p63 = scmp.eq.s32.totalorder %s20, 1
      %p64 = por %p62, %p63
      %p66 = scmp.ne.s32.totalorder %s51, %s65
      %p67 = scmp.eq.s32.totalorder %s20, 0
      %p68 = por %p66, %p67
      %s70 = sadd.s32 %s69, 1
      %p73 = scmp.eq.s32.totalorder %s14, 1
      %p74 = scmp.ne.s32.totalorder %s69, %s71
      %p75 = scmp.eq.s32.totalorder %s14, 0
      %p76 = por %p74, %p75
      %p77 = scmp.ne.s32.totalorder %s69, %s71
      %p78 = scmp.eq.s32.totalorder %s19, 1
      %p79 = por %p77, %p78
      %p80 = scmp.ne.s32.totalorder %s71, %s72
      %p81 = scmp.eq.s32.totalorder %s19, 0
      %p82 = por %p80, %p81
      %p83 = scmp.ne.s32.totalorder %s71, %s72
      %p84 = scmp.eq.s32.totalorder %s20, 1
      %p85 = por %p83, %p84
      %p87 = scmp.ne.s32.totalorder %s72, %s86
      %p88 = scmp.eq.s32.totalorder %s20, 0
      %p89 = por %p87, %p88
      %s91 = sadd.s32 %s90, 1
      %p94 = scmp.eq.s32.totalorder %s14, 1
      %p95 = scmp.ne.s32.totalorder %s90, %s92
      %p96 = scmp.eq.s32.totalorder %s14, 0
      %p97 = por %p95, %p96
      %p98 = scmp.ne.s32.totalorder %s90, %s92
      %p99 = scmp.eq.s32.totalorder %s19, 1
      %p100 = por %p98, %p99
      %p101 = scmp.ne.s32.totalorder %s92, %s93
      %p102 = scmp.eq.s32.totalorder %s19, 0
      %p103 = por %p101, %p102
      %p104 = scmp.ne.s32.totalorder %s92, %s93
      %p105 = scmp.eq.s32.totalorder %s20, 1
      %p106 = por %p104, %p105
      %p108 = scmp.ne.s32.totalorder %s93, %s107
      %p109 = scmp.eq.s32.totalorder %s20, 0
      %p110 = por %p108, %p109
      %s112 = sadd.s32 %s111, 1
      %p115 = scmp.eq.s32.totalorder %s14, 1
      %p116 = scmp.ne.s32.totalorder %s111, %s113
      %p117 = scmp.eq.s32.totalorder %s14, 0
      %p118 = por %p116, %p117
      %p119 = scmp.ne.s32.totalorder %s111, %s113
      %p120 = scmp.eq.s32.totalorder %s19, 1
      %p121 = por %p119, %p120
      %p122 = scmp.ne.s32.totalorder %s113, %s114
      %p123 = scmp.eq.s32.totalorder %s19, 0
      %p124 = por %p122, %p123
      %p125 = scmp.ne.s32.totalorder %s113, %s114
      %p126 = scmp.eq.s32.totalorder %s20, 1
      %p127 = por %p125, %p126
      %p129 = scmp.ne.s32.totalorder %s114, %s128
      %p130 = scmp.eq.s32.totalorder %s20, 0
      %p131 = por %p129, %p130
      %s132 = ssub.s32 %s14, %s21
      %p133 = scmp.eq.s32.totalorder %s132, 0
      %s135 = sadd.s32 %s134, 1
      %s136 = scalar_select %p133, %s134, %s135
      %p139 = pneg %p133
      %p140 = scmp.eq.s32.totalorder %s14, 1
      %p141 = por %p139, %p140
      %p142 = scmp.ne.s32.totalorder %s134, %s137
      %p143 = scmp.eq.s32.totalorder %s14, 0
      %p144 = por %p142, %p143
      %p145 = scmp.ne.s32.totalorder %s134, %s137
      %p146 = scmp.eq.s32.totalorder %s19, 1
      %p147 = por %p145, %p146
      %p148 = scmp.ne.s32.totalorder %s137, %s138
      %p149 = scmp.eq.s32.totalorder %s19, 0
      %p150 = por %p148, %p149
      %p151 = scmp.ne.s32.totalorder %s137, %s138
      %p152 = scmp.eq.s32.totalorder %s20, 1
      %p153 = por %p151, %p152
      %p155 = scmp.ne.s32.totalorder %s138, %s154
      %p156 = scmp.eq.s32.totalorder %s20, 0
      %p157 = por %p155, %p156
      %p158 = scmp.le.s32.totalorder 1, %s14
      %p159 = scmp.lt.s32.totalorder %s14, 3
      %p160 = pnand %p158, %p159
      %p161 = pneg %p160
      // Predicated region
      $region9: #{bengali_classifier_single.1} parent=5 // pred_check
        _
      $region10: #{bengali_classifier_single.1} parent=5 // pred_check_branch
        %163 = sbr.rel (%p160) target = $region12
      $region11: #{bengali_classifier_single.1} parent=5 // pred_region
        %s164 = ssub.s32 %s14, 1
        // Predicated region
        $region13: #{bengali_classifier_single.1} parent=11 // pred_check
          %p165 = pneg %p61
        $region14: #{bengali_classifier_single.1} parent=11 // pred_check_branch
          %167 = sbr.rel (%p165) target = $region16
        $region15: #{bengali_classifier_single.1} parent=11 // pred_region
          _
        $region16: #{bengali_classifier_single.1} parent=11 // pred_fallthru
          _
        // Predicated region
        $region17: #{bengali_classifier_single.1} parent=11 // pred_check
          %p168 = pneg %p82
        $region18: #{bengali_classifier_single.1} parent=11 // pred_check_branch
          %170 = sbr.rel (%p168) target = $region20
        $region19: #{bengali_classifier_single.1} parent=11 // pred_region
          _
        $region20: #{bengali_classifier_single.1} parent=11 // pred_fallthru
          _
        // Predicated region
        $region21: #{bengali_classifier_single.1} parent=11 // pred_check
          %p171 = pneg %p103
        $region22: #{bengali_classifier_single.1} parent=11 // pred_check_branch
          %173 = sbr.rel (%p171) target = $region24
        $region23: #{bengali_classifier_single.1} parent=11 // pred_region
          _
        $region24: #{bengali_classifier_single.1} parent=11 // pred_fallthru
          _
        // Predicated region
        $region25: #{bengali_classifier_single.1} parent=11 // pred_check
          %p174 = pneg %p124
        $region26: #{bengali_classifier_single.1} parent=11 // pred_check_branch
          %176 = sbr.rel (%p174) target = $region28
        $region27: #{bengali_classifier_single.1} parent=11 // pred_region
          _
        $region28: #{bengali_classifier_single.1} parent=11 // pred_fallthru
          _
      $region12: #{bengali_classifier_single.1} parent=5 // pred_fallthru
        _
      %p177 = scmp.lt.s32.totalorder %s14, 2
      // Predicated region
      $region29: #{bengali_classifier_single.1} parent=5 // pred_check
        %p178 = pneg %p177
      $region30: #{bengali_classifier_single.1} parent=5 // pred_check_branch
        %180 = sbr.rel (%p178) target = $region32
      $region31: #{bengali_classifier_single.1} parent=5 // pred_region
        // Predicated region
        $region33: #{bengali_classifier_single.1} parent=31 // pred_check
          %p181 = pneg %p34
        $region34: #{bengali_classifier_single.1} parent=31 // pred_check_branch
          %183 = sbr.rel (%p181) target = $region36
        $region35: #{bengali_classifier_single.1} parent=31 // pred_region
          %p184 = scmp.lt.s32.totalorder %s14, 1
          %s185 = scalar_select %p184, %s14, 1
          %s186 = smul.addr %s185, 3
          %s187 = smul.addr %s186, 2
          %s188 = scalar_lea.vmem %s0, %s187
        $region36: #{bengali_classifier_single.1} parent=31 // pred_fallthru
          _
      $region32: #{bengali_classifier_single.1} parent=5 // pred_fallthru
        _
      %p189 = scmp.le.s32.totalorder 1, %s14
      %p190 = scmp.lt.s32.totalorder %s14, 3
      %p191 = pnand %p189, %p190
      %p192 = pneg %p191
      // Predicated region
      $region37: #{bengali_classifier_single.1} parent=5 // pred_check
        _
      $region38: #{bengali_classifier_single.1} parent=5 // pred_check_branch
        %194 = sbr.rel (%p191) target = $region40
      $region39: #{bengali_classifier_single.1} parent=5 // pred_region
        %s195 = ssub.s32 %s14, 1
        %p196 = scmp.lt.s32.totalorder %s19, 1
        %s197 = scalar_select %p196, %s19, 1
        %s198 = smul.addr %s197, 3
        %s199 = smul.addr %s198, 2
        %s200 = scalar_lea.vmem %s0, %s199
        %p201 = pneg %p40
        %p202 = pneg %p37
        %p203 = pneg %p61
        %p204 = pneg %p58
        %p205 = pneg %p82
        %p206 = pneg %p79
        %p207 = pneg %p103
        %p208 = pneg %p100
        %p209 = pneg %p124
        %p210 = pneg %p121
        %p211 = pneg %p150
        %p212 = pneg %p147
        %s213 = sand.u32 %s137, 1
        %s214 = scalar_lea.sflag [#allocation3], %s213
        %s215 = sand.u32 %s137, 1
        %s216 = scalar_lea.vmem [#allocation2], %s215
        %p217 = scmp.lt.s32.totalorder %s19, 1
        %s218 = scalar_select %p217, %s19, 1
        %s219 = smul.addr %s218, 3
        %s220 = smul.addr %s219, 2
        %s221 = scalar_lea.vmem %s0, %s220
        %v223 = vlaneseq
        %v224 = vand.u32 %v223, 127
        %v225 = vadd.s32 %v224, 128
        %vm226 = vcmp.lt.s32.totalorder %v224, 0
        %v227 = vsub.s32 0, %v224
        %v228 = vsel %vm226, %v227, %v224
        %v229 = vshrl.u32 %v228, 4
        %v230 = vand.u32 %v228, 15
        %v231 = vsub.s32 0, %v230
        %v232 = vsel %vm226, %v231, %v230
        %vm233 = vcmp.lt.s32.totalorder %v225, 0
        %v234 = vsub.s32 0, %v225
        %v235 = vsel %vm233, %v234, %v225
        %v236 = vshrl.u32 %v235, 4
        %v237 = vand.u32 %v235, 15
        %v238 = vsub.s32 0, %v237
        %v239 = vsel %vm233, %v238, %v237
        %vm240 = vcmp.ne.s32.totalorder %v232, 0
        %vm241 = vcmp.ne.s32.totalorder %v239, 0
        %vm242 = vcmp.lt.s32.totalorder %v232, 0
        %vm243 = vcmp.lt.s32.totalorder %v239, 0
        %vm244 = vmand %vm242, %vm240
        %vm245 = vmand %vm243, %vm241
        %v246 = vadd.s32 %v232, 16
        %v247 = vadd.s32 %v239, 16
        %v248 = vsel %vm244, %v246, %v232
        %v249 = vsel %vm245, %v247, %v239
        %v250 = vld [vmem:[%s221] sm:$0xf]
        %v251 = vld [vmem:[%s1] sm:$0xf]
        %v252 = vld [vmem:[%s221] sm:$0x3f]
        %s253 = scalar_lea.vmem %s1, 12
        %v254 = vld [vmem:[%s253] sm:$0xf]
        %256 = vst [vmem:[#allocation1] ss:$4 sm:$0xff] %v252
        %v257 = vld.sshfl [vmem:[#allocation1] sm:$0xff pattern:$0x73625140]
        %v259 = vld.sshfl [vmem:[#allocation1 + $0x8] sm:$0xff pattern:$0x73625140]
        %v261 = vld.sshfl [vmem:[#allocation1 + $0x10] sm:$0xff pattern:$0x73625140]
        %263 = vrot.lane.b32.xlu0 %v257, 112
        %v264 = vpop.permute.xlu0 %263
        %265 = vrot.lane.b32.xlu0 %v259, 112
        %v266 = vpop.permute.xlu0 %265
        %267 = vrot.lane.b32.xlu0 %v261, 112
        %v268 = vpop.permute.xlu0 %267
        %vm269 = vcmask 916480
        %v270 = vsel %vm269, %v264, %v266
        %v271 = vsel %vm269, %v266, %v268
        %vm272 = vcmask 31744
        %v274 = vsel %vm272, %v254, 0
        %vm276 = vcmask 1041408
        %v278 = vsel %vm276, %v270, 0
        %v281 = vsel %vm276, %v271, 0
        %283 = vmatpush.bf16.msra.mxu0 0
        %284 = vmatpush.bf16.msra.mxu0 0
        %285 = vmatpush.bf16.msra.mxu0 0
        %286 = vmatpush.bf16.msra.mxu0 0
        %287 = vmatpush.bf16.msra.mxu0 0
        %288 = vmatpush.bf16.msra.mxu0 0
        %289 = vmatpush.bf16.msra.mxu0 0
        %290 = vmatpush.bf16.msra.mxu0 %v278
        %291 = vmatmul.bf16.gmra.mxu0 %v274
        %v292 = vpop.f32.mrf.mxu0
        %v293 = vadd.f32 0.0, %v292
        %v294 = vpop.f32.mrf.mxu0
        %295 = vdwg.mxu0
        %296 = vmatpush.bf16.msra.mxu0 0
        %297 = vmatpush.bf16.msra.mxu0 0
        %298 = vmatpush.bf16.msra.mxu0 0
        %299 = vmatpush.bf16.msra.mxu0 0
        %300 = vmatpush.bf16.msra.mxu0 0
        %301 = vmatpush.bf16.msra.mxu0 0
        %302 = vmatpush.bf16.msra.mxu0 0
        %303 = vmatpush.bf16.msra.mxu0 %v281
        %304 = vmatmul.bf16.gmra.mxu0 %v274
        %v305 = vpop.f32.mrf.mxu0
        %v306 = vadd.f32 0.0, %v305
        %v307 = vpop.f32.mrf.mxu0
        %308 = vdwg.mxu0
        %310 = vst [vmem:[#allocation1] ss:$4 sm:$0xff] %v250
        %v311 = vld.sshfl [vmem:[#allocation1] sm:$0xff pattern:$0x73625140]
        %v312 = vld.sshfl [vmem:[#allocation1 + $0x8] sm:$0xff pattern:$0x73625140]
        %v314 = vsel %vm272, %v251, 0
        %v316 = vsel %vm276, %v311, 0
        %v318 = vsel %vm276, %v312, 0
        %320 = vmatpush.bf16.msra.mxu0 0
        %321 = vmatpush.bf16.msra.mxu0 0
        %322 = vmatpush.bf16.msra.mxu0 0
        %323 = vmatpush.bf16.msra.mxu0 0
        %324 = vmatpush.bf16.msra.mxu0 0
        %325 = vmatpush.bf16.msra.mxu0 0
        %326 = vmatpush.bf16.msra.mxu0 0
        %327 = vmatpush.bf16.msra.mxu0 %v316
        %328 = vmatmul.bf16.gmra.mxu0 %v314
        %v329 = vpop.f32.mrf.mxu0
        %v330 = vadd.f32 %v293, %v329
        %v331 = vpop.f32.mrf.mxu0
        %332 = vdwg.mxu0
        %333 = vmatpush.bf16.msra.mxu0 0
        %334 = vmatpush.bf16.msra.mxu0 0
        %335 = vmatpush.bf16.msra.mxu0 0
        %336 = vmatpush.bf16.msra.mxu0 0
        %337 = vmatpush.bf16.msra.mxu0 0
        %338 = vmatpush.bf16.msra.mxu0 0
        %339 = vmatpush.bf16.msra.mxu0 0
        %340 = vmatpush.bf16.msra.mxu0 %v318
        %341 = vmatmul.bf16.gmra.mxu0 %v314
        %v342 = vpop.f32.mrf.mxu0
        %v343 = vadd.f32 %v306, %v342
        %v344 = vpop.f32.mrf.mxu0
        %345 = vdwg.mxu0
        %v346 = vld [vmem:[%s221] sm:$0x3f]
        %s347 = scalar_lea.vmem %s1, 24
        %v348 = vld [vmem:[%s347] sm:$0xf]
        %350 = vst [vmem:[#allocation1] ss:$4 sm:$0xff] %v346
        %v351 = vld.sshfl [vmem:[#allocation1] sm:$0xff pattern:$0x73625140]
        %v353 = vld.sshfl [vmem:[#allocation1 + $0x8] sm:$0xff pattern:$0x73625140]
        %v355 = vld.sshfl [vmem:[#allocation1 + $0x10] sm:$0xff pattern:$0x73625140]
        %357 = vrot.lane.b32.xlu0 %v351, 96
        %v358 = vpop.permute.xlu0 %357
        %359 = vrot.lane.b32.xlu0 %v353, 96
        %v360 = vpop.permute.xlu0 %359
        %361 = vrot.lane.b32.xlu0 %v355, 96
        %v362 = vpop.permute.xlu0 %361
        %vm363 = vcmask 785408
        %v364 = vsel %vm363, %v358, %v360
        %v365 = vsel %vm363, %v360, %v362
        %v367 = vsel %vm272, %v348, 0
        %v370 = vsel %vm276, %v364, 0
        %v373 = vsel %vm276, %v365, 0
        %375 = vmatpush.bf16.msra.mxu0 0
        %376 = vmatpush.bf16.msra.mxu0 0
        %377 = vmatpush.bf16.msra.mxu0 0
        %378 = vmatpush.bf16.msra.mxu0 0
        %379 = vmatpush.bf16.msra.mxu0 0
        %380 = vmatpush.bf16.msra.mxu0 0
        %381 = vmatpush.bf16.msra.mxu0 0
        %382 = vmatpush.bf16.msra.mxu0 %v370
        %383 = vmatmul.bf16.gmra.mxu0 %v367
        %v384 = vpop.f32.mrf.mxu0
        %v385 = vadd.f32 0.0, %v384
        %v386 = vpop.f32.mrf.mxu0
        %387 = vdwg.mxu0
        %388 = vmatpush.bf16.msra.mxu0 0
        %389 = vmatpush.bf16.msra.mxu0 0
        %390 = vmatpush.bf16.msra.mxu0 0
        %391 = vmatpush.bf16.msra.mxu0 0
        %392 = vmatpush.bf16.msra.mxu0 0
        %393 = vmatpush.bf16.msra.mxu0 0
        %394 = vmatpush.bf16.msra.mxu0 0
        %395 = vmatpush.bf16.msra.mxu0 %v373
        %396 = vmatmul.bf16.gmra.mxu0 %v367
        %v397 = vpop.f32.mrf.mxu0
        %v398 = vadd.f32 0.0, %v397
        %v399 = vpop.f32.mrf.mxu0
        %400 = vdwg.mxu0
        %v401 = vadd.f32 %v330, %v385
        %v402 = vadd.f32 %v343, %v398
        %vm403 = vcmp.ge.s32.totalorder %v248, 1
        %vm404 = vcmp.ge.s32.totalorder %v249, 1
        %v405 = vsel %vm403, 1, 0
        %v406 = vsel %vm404, 1, 0
        %vm407 = vcmp.eq.s32.totalorder %v405, 1
        %vm408 = vcmp.eq.s32.totalorder %v406, 1
        %v409 = vsel %vm407, %v401, 0.0
        %v410 = vsel %vm408, %v402, 0.0
        %v411 = vadd.f32 %v409, 0.0
        %v412 = vadd.f32 %v410, 0.0
        %v413 = vld [vmem:[%s221] sm:$0x3f]
        %s414 = scalar_lea.vmem %s1, 4
        %v415 = vld [vmem:[%s414] sm:$0xf]
        %s416 = scalar_lea.vmem %s1, 16
        %v417 = vld [vmem:[%s416] sm:$0xf]
        %419 = vst [vmem:[#allocation1] ss:$4 sm:$0xff] %v413
        %v420 = vld.sshfl [vmem:[#allocation1] sm:$0xff pattern:$0x73625140]
        %v422 = vld.sshfl [vmem:[#allocation1 + $0x8] sm:$0xff pattern:$0x73625140]
        %v424 = vld.sshfl [vmem:[#allocation1 + $0x10] sm:$0xff pattern:$0x73625140]
        %426 = vrot.lane.b32.xlu0 %v420, 111
        %v427 = vpop.permute.xlu0 %426
        %428 = vrot.lane.b32.xlu0 %v422, 111
        %v429 = vpop.permute.xlu0 %428
        %430 = vrot.lane.b32.xlu0 %v424, 111
        %v431 = vpop.permute.xlu0 %430
        %vm432 = vcmask 908288
        %v433 = vsel %vm432, %v427, %v429
        %v434 = vsel %vm432, %v429, %v431
        %v436 = vsel %vm272, %v417, 0
        %v439 = vsel %vm276, %v433, 0
        %v442 = vsel %vm276, %v434, 0
        %444 = vmatpush.bf16.msra.mxu0 0
        %445 = vmatpush.bf16.msra.mxu0 0
        %446 = vmatpush.bf16.msra.mxu0 0
        %447 = vmatpush.bf16.msra.mxu0 0
        %448 = vmatpush.bf16.msra.mxu0 0
        %449 = vmatpush.bf16.msra.mxu0 0
        %450 = vmatpush.bf16.msra.mxu0 0
        %451 = vmatpush.bf16.msra.mxu0 %v439
        %452 = vmatmul.bf16.gmra.mxu0 %v436
        %v453 = vpop.f32.mrf.mxu0
        %v454 = vadd.f32 0.0, %v453
        %v455 = vpop.f32.mrf.mxu0
        %456 = vdwg.mxu0
        %457 = vmatpush.bf16.msra.mxu0 0
        %458 = vmatpush.bf16.msra.mxu0 0
        %459 = vmatpush.bf16.msra.mxu0 0
        %460 = vmatpush.bf16.msra.mxu0 0
        %461 = vmatpush.bf16.msra.mxu0 0
        %462 = vmatpush.bf16.msra.mxu0 0
        %463 = vmatpush.bf16.msra.mxu0 0
        %464 = vmatpush.bf16.msra.mxu0 %v442
        %465 = vmatmul.bf16.gmra.mxu0 %v436
        %v466 = vpop.f32.mrf.mxu0
        %v467 = vadd.f32 0.0, %v466
        %v468 = vpop.f32.mrf.mxu0
        %469 = vdwg.mxu0
        %470 = vst [vmem:[#allocation1] ss:$4 sm:$0xff] %v413
        %v471 = vld.sshfl [vmem:[#allocation1] sm:$0xff pattern:$0x73625140]
        %v473 = vld.sshfl [vmem:[#allocation1 + $0x8] sm:$0xff pattern:$0x73625140]
        %v475 = vld.sshfl [vmem:[#allocation1 + $0x10] sm:$0xff pattern:$0x73625140]
        %477 = vrot.lane.b32.xlu0 %v471, 127
        %v478 = vpop.permute.xlu0 %477
        %479 = vrot.lane.b32.xlu0 %v473, 127
        %v480 = vpop.permute.xlu0 %479
        %481 = vrot.lane.b32.xlu0 %v475, 127
        %v482 = vpop.permute.xlu0 %481
        %vm483 = vcmask 1039360
        %v484 = vsel %vm483, %v478, %v480
        %v485 = vsel %vm483, %v480, %v482
        %v487 = vsel %vm272, %v415, 0
        %v490 = vsel %vm276, %v484, 0
        %v493 = vsel %vm276, %v485, 0
        %495 = vmatpush.bf16.msra.mxu0 0
        %496 = vmatpush.bf16.msra.mxu0 0
        %497 = vmatpush.bf16.msra.mxu0 0
        %498 = vmatpush.bf16.msra.mxu0 0
        %499 = vmatpush.bf16.msra.mxu0 0
        %500 = vmatpush.bf16.msra.mxu0 0
        %501 = vmatpush.bf16.msra.mxu0 0
        %502 = vmatpush.bf16.msra.mxu0 %v490
        %503 = vmatmul.bf16.gmra.mxu0 %v487
        %v504 = vpop.f32.mrf.mxu0
        %v505 = vadd.f32 %v454, %v504
        %v506 = vpop.f32.mrf.mxu0
        %507 = vdwg.mxu0
        %508 = vmatpush.bf16.msra.mxu0 0
        %509 = vmatpush.bf16.msra.mxu0 0
        %510 = vmatpush.bf16.msra.mxu0 0
        %511 = vmatpush.bf16.msra.mxu0 0
        %512 = vmatpush.bf16.msra.mxu0 0
        %513 = vmatpush.bf16.msra.mxu0 0
        %514 = vmatpush.bf16.msra.mxu0 0
        %515 = vmatpush.bf16.msra.mxu0 %v493
        %516 = vmatmul.bf16.gmra.mxu0 %v487
        %v517 = vpop.f32.mrf.mxu0
        %v518 = vadd.f32 %v467, %v517
        %v519 = vpop.f32.mrf.mxu0
        %520 = vdwg.mxu0
        %v521 = vld [vmem:[%s221] sm:$0x3f]
        %s522 = scalar_lea.vmem %s1, 28
        %v523 = vld [vmem:[%s522] sm:$0xf]
        %525 = vst [vmem:[#allocation1] ss:$4 sm:$0xff] %v521
        %v526 = vld.sshfl [vmem:[#allocation1] sm:$0xff pattern:$0x73625140]
        %v528 = vld.sshfl [vmem:[#allocation1 + $0x8] sm:$0xff pattern:$0x73625140]
        %v530 = vld.sshfl [vmem:[#allocation1 + $0x10] sm:$0xff pattern:$0x73625140]
        %532 = vrot.lane.b32.xlu0 %v526, 95
        %v533 = vpop.permute.xlu0 %532
        %534 = vrot.lane.b32.xlu0 %v528, 95
        %v535 = vpop.permute.xlu0 %534
        %536 = vrot.lane.b32.xlu0 %v530, 95
        %v537 = vpop.permute.xlu0 %536
        %vm538 = vcmask 777216
        %v539 = vsel %vm538, %v533, %v535
        %v540 = vsel %vm538, %v535, %v537
        %v542 = vsel %vm272, %v523, 0
        %v545 = vsel %vm276, %v539, 0
        %v548 = vsel %vm276, %v540, 0
        %550 = vmatpush.bf16.msra.mxu0 0
        %551 = vmatpush.bf16.msra.mxu0 0
        %552 = vmatpush.bf16.msra.mxu0 0
        %553 = vmatpush.bf16.msra.mxu0 0
        %554 = vmatpush.bf16.msra.mxu0 0
        %555 = vmatpush.bf16.msra.mxu0 0
        %556 = vmatpush.bf16.msra.mxu0 0
        %557 = vmatpush.bf16.msra.mxu0 %v545
        %558 = vmatmul.bf16.gmra.mxu0 %v542
        %v559 = vpop.f32.mrf.mxu0
        %v560 = vadd.f32 0.0, %v559
        %v561 = vpop.f32.mrf.mxu0
        %562 = vdwg.mxu0
        %563 = vmatpush.bf16.msra.mxu0 0
        %564 = vmatpush.bf16.msra.mxu0 0
        %565 = vmatpush.bf16.msra.mxu0 0
        %566 = vmatpush.bf16.msra.mxu0 0
        %567 = vmatpush.bf16.msra.mxu0 0
        %568 = vmatpush.bf16.msra.mxu0 0
        %569 = vmatpush.bf16.msra.mxu0 0
        %570 = vmatpush.bf16.msra.mxu0 %v548
        %571 = vmatmul.bf16.gmra.mxu0 %v542
        %v572 = vpop.f32.mrf.mxu0
        %v573 = vadd.f32 0.0, %v572
        %v574 = vpop.f32.mrf.mxu0
        %575 = vdwg.mxu0
        %v576 = vadd.f32 %v505, %v560
        %v577 = vadd.f32 %v518, %v573
        %v578 = vadd.f32 %v411, %v576
        %v579 = vadd.f32 %v412, %v577
        %v580 = vld [vmem:[%s221] sm:$0x3f]
        %s581 = scalar_lea.vmem %s1, 8
        %v582 = vld [vmem:[%s581] sm:$0xf]
        %s583 = scalar_lea.vmem %s1, 20
        %v584 = vld [vmem:[%s583] sm:$0xf]
        %586 = vst [vmem:[#allocation1] ss:$4 sm:$0xff] %v580
        %v587 = vld.sshfl [vmem:[#allocation1] sm:$0xff pattern:$0x73625140]
        %v589 = vld.sshfl [vmem:[#allocation1 + $0x8] sm:$0xff pattern:$0x73625140]
        %v591 = vld.sshfl [vmem:[#allocation1 + $0x10] sm:$0xff pattern:$0x73625140]
        %593 = vrot.lane.b32.xlu0 %v587, 110
        %v594 = vpop.permute.xlu0 %593
        %595 = vrot.lane.b32.xlu0 %v589, 110
        %v596 = vpop.permute.xlu0 %595
        %597 = vrot.lane.b32.xlu0 %v591, 110
        %v598 = vpop.permute.xlu0 %597
        %vm599 = vcmask 900096
        %v600 = vsel %vm599, %v594, %v596
        %v601 = vsel %vm599, %v596, %v598
        %v603 = vsel %vm272, %v584, 0
        %v606 = vsel %vm276, %v600, 0
        %v609 = vsel %vm276, %v601, 0
        %611 = vmatpush.bf16.msra.mxu0 0
        %612 = vmatpush.bf16.msra.mxu0 0
        %613 = vmatpush.bf16.msra.mxu0 0
        %614 = vmatpush.bf16.msra.mxu0 0
        %615 = vmatpush.bf16.msra.mxu0 0
        %616 = vmatpush.bf16.msra.mxu0 0
        %617 = vmatpush.bf16.msra.mxu0 0
        %618 = vmatpush.bf16.msra.mxu0 %v606
        %619 = vmatmul.bf16.gmra.mxu0 %v603
        %v620 = vpop.f32.mrf.mxu0
        %v621 = vadd.f32 0.0, %v620
        %v622 = vpop.f32.mrf.mxu0
        %623 = vdwg.mxu0
        %624 = vmatpush.bf16.msra.mxu0 0
        %625 = vmatpush.bf16.msra.mxu0 0
        %626 = vmatpush.bf16.msra.mxu0 0
        %627 = vmatpush.bf16.msra.mxu0 0
        %628 = vmatpush.bf16.msra.mxu0 0
        %629 = vmatpush.bf16.msra.mxu0 0
        %630 = vmatpush.bf16.msra.mxu0 0
        %631 = vmatpush.bf16.msra.mxu0 %v609
        %632 = vmatmul.bf16.gmra.mxu0 %v603
        %v633 = vpop.f32.mrf.mxu0
        %v634 = vadd.f32 0.0, %v633
        %v635 = vpop.f32.mrf.mxu0
        %636 = vdwg.mxu0
        %637 = vst [vmem:[#allocation1] ss:$4 sm:$0xff] %v580
        %v638 = vld.sshfl [vmem:[#allocation1] sm:$0xff pattern:$0x73625140]
        %v640 = vld.sshfl [vmem:[#allocation1 + $0x8] sm:$0xff pattern:$0x73625140]
        %v642 = vld.sshfl [vmem:[#allocation1 + $0x10] sm:$0xff pattern:$0x73625140]
        %644 = vrot.lane.b32.xlu0 %v638, 126
        %v645 = vpop.permute.xlu0 %644
        %646 = vrot.lane.b32.xlu0 %v640, 126
        %v647 = vpop.permute.xlu0 %646
        %648 = vrot.lane.b32.xlu0 %v642, 126
        %v649 = vpop.permute.xlu0 %648
        %vm650 = vcmask 1031168
        %v651 = vsel %vm650, %v645, %v647
        %v652 = vsel %vm650, %v647, %v649
        %v654 = vsel %vm272, %v582, 0
        %v657 = vsel %vm276, %v651, 0
        %v660 = vsel %vm276, %v652, 0
        %662 = vmatpush.bf16.msra.mxu0 0
        %663 = vmatpush.bf16.msra.mxu0 0
        %664 = vmatpush.bf16.msra.mxu0 0
        %665 = vmatpush.bf16.msra.mxu0 0
        %666 = vmatpush.bf16.msra.mxu0 0
        %667 = vmatpush.bf16.msra.mxu0 0
        %668 = vmatpush.bf16.msra.mxu0 0
        %669 = vmatpush.bf16.msra.mxu0 %v657
        %670 = vmatmul.bf16.gmra.mxu0 %v654
        %v671 = vpop.f32.mrf.mxu0
        %v672 = vadd.f32 %v621, %v671
        %v673 = vpop.f32.mrf.mxu0
        %674 = vdwg.mxu0
        %675 = vmatpush.bf16.msra.mxu0 0
        %676 = vmatpush.bf16.msra.mxu0 0
        %677 = vmatpush.bf16.msra.mxu0 0
        %678 = vmatpush.bf16.msra.mxu0 0
        %679 = vmatpush.bf16.msra.mxu0 0
        %680 = vmatpush.bf16.msra.mxu0 0
        %681 = vmatpush.bf16.msra.mxu0 0
        %682 = vmatpush.bf16.msra.mxu0 %v660
        %683 = vmatmul.bf16.gmra.mxu0 %v654
        %v684 = vpop.f32.mrf.mxu0
        %v685 = vadd.f32 %v634, %v684
        %v686 = vpop.f32.mrf.mxu0
        %687 = vdwg.mxu0
        %v688 = vld [vmem:[%s221] sm:$0x3f]
        %s689 = scalar_lea.vmem %s1, 32
        %v690 = vld [vmem:[%s689] sm:$0xf]
        %692 = vst [vmem:[#allocation1] ss:$4 sm:$0xff] %v688
        %v693 = vld.sshfl [vmem:[#allocation1] sm:$0xff pattern:$0x73625140]
        %v695 = vld.sshfl [vmem:[#allocation1 + $0x8] sm:$0xff pattern:$0x73625140]
        %v697 = vld.sshfl [vmem:[#allocation1 + $0x10] sm:$0xff pattern:$0x73625140]
        %699 = vrot.lane.b32.xlu0 %v693, 94
        %v700 = vpop.permute.xlu0 %699
        %701 = vrot.lane.b32.xlu0 %v695, 94
        %v702 = vpop.permute.xlu0 %701
        %703 = vrot.lane.b32.xlu0 %v697, 94
        %v704 = vpop.permute.xlu0 %703
        %vm705 = vcmask 769024
        %v706 = vsel %vm705, %v700, %v702
        %v707 = vsel %vm705, %v702, %v704
        %v709 = vsel %vm272, %v690, 0
        %v712 = vsel %vm276, %v706, 0
        %v715 = vsel %vm276, %v707, 0
        %717 = vmatpush.bf16.msra.mxu0 0
        %718 = vmatpush.bf16.msra.mxu0 0
        %719 = vmatpush.bf16.msra.mxu0 0
        %720 = vmatpush.bf16.msra.mxu0 0
        %721 = vmatpush.bf16.msra.mxu0 0
        %722 = vmatpush.bf16.msra.mxu0 0
        %723 = vmatpush.bf16.msra.mxu0 0
        %724 = vmatpush.bf16.msra.mxu0 %v712
        %725 = vmatmul.bf16.gmra.mxu0 %v709
        %v726 = vpop.f32.mrf.mxu0
        %v727 = vadd.f32 0.0, %v726
        %v728 = vpop.f32.mrf.mxu0
        %729 = vdwg.mxu0
        %730 = vmatpush.bf16.msra.mxu0 0
        %731 = vmatpush.bf16.msra.mxu0 0
        %732 = vmatpush.bf16.msra.mxu0 0
        %733 = vmatpush.bf16.msra.mxu0 0
        %734 = vmatpush.bf16.msra.mxu0 0
        %735 = vmatpush.bf16.msra.mxu0 0
        %736 = vmatpush.bf16.msra.mxu0 0
        %737 = vmatpush.bf16.msra.mxu0 %v715
        %738 = vmatmul.bf16.gmra.mxu0 %v709
        %v739 = vpop.f32.mrf.mxu0
        %v740 = vadd.f32 0.0, %v739
        %v741 = vpop.f32.mrf.mxu0
        %742 = vdwg.mxu0
        %v743 = vadd.f32 %v672, %v727
        %v744 = vadd.f32 %v685, %v740
        %vm745 = vcmp.le.s32.totalorder %v248, 14
        %vm746 = vcmp.le.s32.totalorder %v249, 14
        %v747 = vsel %vm745, 1, 0
        %v748 = vsel %vm746, 1, 0
        %vm749 = vcmp.eq.s32.totalorder %v747, 1
        %vm750 = vcmp.eq.s32.totalorder %v748, 1
        %v751 = vsel %vm749, %v743, 0.0
        %v752 = vsel %vm750, %v744, 0.0
        %v753 = vadd.f32 %v578, %v751
        %v754 = vadd.f32 %v579, %v752
        %v755 = vld [vmem:[%s2] sm:$0xff]
        %757 = vset.pattern.permute.xlu0 0
        %758 = vperm.xlu0 %757, %v755
        %v759 = vpop.permute.xlu0 %758
        %v761 = vadd.f32 %v753, %v759
        %v762 = vadd.f32 %v754, %v759
        %v763 = vmax.f32 %v761, 0.0
        %v764 = vmax.f32 %v762, 0.0
        %v765 = vadd.f32 %v763, %v764
        %766 = vadd.xlane.f32.xlu0 %v765
        %v767 = vpop.xlane.xlu0 %766
        %v768 = vld [vmem:[%s3] sm:$0xff]
        %v769 = vmul.f32 %v767, %v768
        %vm770 = vcmask 130048
        %v771 = vsel %vm770, %v769, 0.0
        %v772 = vrot.slane %v771, 4
        %v773 = vadd.f32 %v771, %v772
        %v774 = vrot.slane %v773, 2
        %v775 = vadd.f32 %v773, %v774
        %v776 = vrot.slane %v775, 1
        %v777 = vadd.f32 %v775, %v776
        %v778 = vld [vmem:[%s4] sm:$0x1]
        %v779 = vadd.f32 %v777, %v778
        %vm780 = vcmask 122880
        %781 = vst.msk [vmem:[%s216] sm:$0x1] %vm780, %v779
        %s782 = sand.u32 %s137, 1
        %s783 = scalar_lea.sflag [#allocation3], %s782
        %s784 = sand.u32 %s137, 1
        %s785 = scalar_lea.vmem [#allocation2], %s784
        // Predicated region
        $region41: #{bengali_classifier_single.1} parent=39 // pred_check
          %p786 = pneg %p147
        $region42: #{bengali_classifier_single.1} parent=39 // pred_check_branch
          %788 = sbr.rel (%p786) target = $region44
        $region43: #{bengali_classifier_single.1} parent=39 // pred_region
          %790 = vsyncadd %s783, 0
          %s791 = scalar_lea.hbm %s5, %s19
          %s793 = sshll.u32 %s785, 4
          %s794 = int_to_ptr.vmem [resolvable:$true] %s793
          %s795 = sshll.u32 %s791, 4
          %s796 = int_to_ptr.hbm [resolvable:$true] %s795
          %798 = dma.vmem_to_hbm [thread:$0]  %s794, 16, %s796, %s783
        $region44: #{bengali_classifier_single.1} parent=39 // pred_fallthru
          _
      $region40: #{bengali_classifier_single.1} parent=5 // pred_fallthru
        _
      %p799 = scmp.le.s32.totalorder 2, %s14
      // Predicated region
      $region45: #{bengali_classifier_single.1} parent=5 // pred_check
        %p800 = pneg %p799
      $region46: #{bengali_classifier_single.1} parent=5 // pred_check_branch
        %802 = sbr.rel (%p800) target = $region48
      $region47: #{bengali_classifier_single.1} parent=5 // pred_region
        %s803 = ssub.s32 %s14, 2
        // Predicated region
        $region49: #{bengali_classifier_single.1} parent=47 // pred_check
          %p804 = pneg %p153
        $region50: #{bengali_classifier_single.1} parent=47 // pred_check_branch
          %806 = sbr.rel (%p804) target = $region52
        $region51: #{bengali_classifier_single.1} parent=47 // pred_region
          %s807 = sand.u32 %s138, 1
          %s808 = scalar_lea.sflag [#allocation3], %s807
          %s809 = sand.u32 %s138, 1
          %s810 = scalar_lea.vmem [#allocation2], %s809
          %812 = dma.done %s808, 16
        $region52: #{bengali_classifier_single.1} parent=47 // pred_fallthru
          _
      $region48: #{bengali_classifier_single.1} parent=5 // pred_fallthru
        _
    $region6: #{bengali_classifier_single.1} parent=1 // loop_footer
      %s18 = sadd.s32 1, %s14
    $region7: #{bengali_classifier_single.1} parent=1 // loop_footer_branch
      %13 = sbr.rel target = $region3
    $region8: #{bengali_classifier_single.1} parent=1 // loop_exit
      _
    %813 = vsyncpa [#allocation3], 1
    %s814 = scalar_lea.sflag [#allocation3], 1
    %815 = vsyncpa %s814, 1

</llo_original>
